<compile_context>
chip_gen: v7x
topology: tpu7x:2x2x1
jax: 0.10.0
libtpu: 0.0.40
codegen_flags: <defaults>
</compile_context>

<pallas_src>
import jax
import jax.numpy as jnp
from jax.experimental import pallas as pl
from jax.experimental.pallas import tpu as pltpu


def _pixel_attention_kernel(x_ref, w1t_ref, b1_ref, w2_ref, b2_ref, o_ref):
    # x_ref / o_ref : (1, C, TN) VMEM tiles (channel on sublane, pixel on lane)
    # w1t_ref       : (Cr, C)  VMEM  (transposed Conv1x1 #1 weights)
    # b1_ref        : (Cr,)    SMEM  scalars
    # w2_ref        : (Cr,)    SMEM  scalars (Conv1x1 #2 weights, output dim 1)
    # b2_ref        : (1,)     SMEM  scalar
    x = x_ref[0].astype(jnp.float32)                     # (C, TN)
    tn = x.shape[1]
    cr = w1t_ref.shape[0]

    # Conv2d(C, Cr, 1): per-pixel channel contraction on the MXU.
    h = jnp.dot(w1t_ref[...], x, preferred_element_type=jnp.float32)  # (Cr, TN)

    # Bias + ReLU + Conv2d(Cr, 1, 1) done elementwise on the VPU (Cr is tiny),
    # avoiding a second (pure-latency) MXU push/pop.
    s = jnp.full((1, tn), b2_ref[0], dtype=jnp.float32)
    for r in range(cr):                                  # static, unrolled
        hr = jnp.maximum(h[r:r + 1, :] + b1_ref[r], 0.0)
        s = s + hr * w2_ref[r]

    attn = jax.nn.sigmoid(s)                             # (1, TN)

    # x * attn_map, broadcast over the channel (sublane) axis; lane-dense store.
    o_ref[0] = (x * attn).astype(o_ref.dtype)


def pixel_attention(x_nchw, w1, b1, w2, b2, *, tn=32768):
    """PixelAttention forward.

    x_nchw: (N, C, H, W)
    w1:     (C, Cr)   -- Conv2d(C, Cr, 1) weights (torch (Cr, C, 1, 1) transposed)
    b1:     (Cr,)
    w2:     (Cr, 1)   -- Conv2d(Cr, 1, 1) weights
    b2:     (1,)
    """
    N, C, H, W = x_nchw.shape
    Cr = w1.shape[1]
    P = H * W

    # NCHW -> (N, C, P): a reshape of a contiguous NCHW tensor, no data movement.
    x_ncp = x_nchw.reshape(N, C, P)

    # Pick the pixel-tile width: either the full pixel extent (no padding, any
    # size is legal for a full-dim block) or a large multiple of 128.
    tn = max(128, (tn // 128) * 128)
    if P <= tn:
        TN = P
        P_pad = P
    else:
        TN = tn
        P_pad = pl.cdiv(P, TN) * TN
        if P_pad != P:
            # Only the ragged tail of the last axis is padded (rare; H*W is
            # usually a multiple of 128 for image workloads).
            x_ncp = jnp.pad(x_ncp, ((0, 0), (0, 0), (0, P_pad - P)))

    w1t = jnp.asarray(w1, jnp.float32).T                 # (Cr, C)
    b1_s = jnp.asarray(b1, jnp.float32).reshape(Cr)      # SMEM scalars
    w2_s = jnp.asarray(w2, jnp.float32).reshape(Cr)      # SMEM scalars
    b2_s = jnp.asarray(b2, jnp.float32).reshape(1)       # SMEM scalar

    grid = (N, P_pad // TN)

    out_ncp = pl.pallas_call(
        _pixel_attention_kernel,
        out_shape=jax.ShapeDtypeStruct((N, C, P_pad), x_nchw.dtype),
        grid_spec=pltpu.PrefetchScalarGridSpec(
            num_scalar_prefetch=0,
            grid=grid,
            in_specs=[
                # Big lane-dense pixel tile of the input.
                pl.BlockSpec((1, C, TN), lambda n, i: (n, 0, i)),
                # Small grid-invariant weight matrix in VMEM.
                pl.BlockSpec((Cr, C), lambda n, i: (0, 0)),
                # Tiny per-channel parameters as SMEM scalars (no padded
                # (8,128) VMEM tiles, no vector loads for them).
                pl.BlockSpec(memory_space=pltpu.MemorySpace.SMEM),
                pl.BlockSpec(memory_space=pltpu.MemorySpace.SMEM),
                pl.BlockSpec(memory_space=pltpu.MemorySpace.SMEM),
            ],
            out_specs=pl.BlockSpec((1, C, TN), lambda n, i: (n, 0, i)),
        ),
        compiler_params=pltpu.CompilerParams(
            dimension_semantics=("parallel", "parallel"),
        ),
    )(x_ncp, w1t, b1_s, w2_s, b2_s)

    if P_pad != P:
        out_ncp = out_ncp[:, :, :P]
    return out_ncp.reshape(N, C, H, W)


def _reference(x_nchw, w1, b1, w2, b2):
    """Plain-JAX reference mirroring the PyTorch module (NCHW, 1x1 convs)."""
    x = x_nchw.astype(jnp.float32)
    h = jnp.einsum("nchw,cr->nrhw", x, w1) + b1[None, :, None, None]
    h = jnp.maximum(h, 0.0)
    s = jnp.einsum("nrhw,ro->nohw", h, w2) + b2[None, :, None, None]
    attn = jax.nn.sigmoid(s)  # (N, 1, H, W)
    return (x * attn).astype(x_nchw.dtype)


if __name__ == "__main__":
    # Module config: nf=16, reduct=8 -> hidden Cr=2
    nf, reduct = 16, 8
    Cr = nf // reduct
    N, H, W = 2, 16, 16

    key = jax.random.PRNGKey(0)
    kx, k1, kb1, k2, kb2 = jax.random.split(key, 5)

    x = jax.random.normal(kx, (N, nf, H, W), dtype=jnp.float32)
    # Conv2d(nf, Cr, 1) weights: torch shape (Cr, nf, 1, 1) -> stored here as (nf, Cr)
    w1 = jax.random.normal(k1, (nf, Cr), dtype=jnp.float32) * 0.1
    b1 = jax.random.normal(kb1, (Cr,), dtype=jnp.float32) * 0.1
    # Conv2d(Cr, 1, 1) weights: torch shape (1, Cr, 1, 1) -> stored here as (Cr, 1)
    w2 = jax.random.normal(k2, (Cr, 1), dtype=jnp.float32) * 0.1
    b2 = jax.random.normal(kb2, (1,), dtype=jnp.float32) * 0.1

    out = pixel_attention(x, w1, b1, w2, b2)
    out = jax.block_until_ready(out)

    ref = _reference(x, w1, b1, w2, b2)
    assert out.shape == x.shape, (out.shape, x.shape)
    assert jnp.allclose(out, ref, atol=1e-5, rtol=1e-5), "mismatch vs reference"

    print("KERNEL_OK")
</pallas_src>

<mosaic_0001>
module attributes {stable_mosaic.version = 11 : i64} {
  func.func @_pixel_attention_kernel(%arg0: i32, %arg1: i32, %arg2: memref<1x16x256xf32, #tpu.memory_space<vmem>>, %arg3: memref<2x16xf32, #tpu.memory_space<vmem>>, %arg4: memref<2xf32, #tpu.memory_space<smem>>, %arg5: memref<2xf32, #tpu.memory_space<smem>>, %arg6: memref<1xf32, #tpu.memory_space<smem>>, %arg7: memref<1x16x256xf32, #tpu.memory_space<vmem>>) attributes {dimension_semantics = [#tpu.dimension_semantics<parallel>, #tpu.dimension_semantics<parallel>], iteration_bounds = array<i64: 2, 1>, scalar_prefetch = 0 : i64, scratch_operands = 0 : i64, tpu.core_type = #tpu.core_type<tc>, window_params = [{transform_indices = @transform_0, window_bounds = array<i64: 1, 16, 256>}, {pipeline_mode = #tpu.pipeline_mode<synchronous>, transform_indices = @transform_1, window_bounds = array<i64: 2, 16>}, {transform_indices = @transform_2, window_bounds = array<i64: 2>}, {transform_indices = @transform_3, window_bounds = array<i64: 2>}, {transform_indices = @transform_4, window_bounds = array<i64: 1>}, {transform_indices = @transform_5, window_bounds = array<i64: 1, 16, 256>}]} {
    %c0 = arith.constant 0 : index
    %c0_0 = arith.constant 0 : index
    %c0_1 = arith.constant 0 : index
    %0 = vector.load %arg2[%c0, %c0_0, %c0_1] : memref<1x16x256xf32, #tpu.memory_space<vmem>>, vector<1x16x256xf32>
    %1 = vector.shape_cast %0 : vector<1x16x256xf32> to vector<16x256xf32>
    %c0_2 = arith.constant 0 : index
    %c0_3 = arith.constant 0 : index
    %2 = vector.load %arg3[%c0_2, %c0_3] : memref<2x16xf32, #tpu.memory_space<vmem>>, vector<2x16xf32>
    %cst = arith.constant dense<0.000000e+00> : vector<2x256xf32>
    %3 = tpu.matmul %2, %1, %cst {dimension_numbers = #tpu.dot_dimension_numbers<[1], [0], [0], [1], [0, 0, 1, 1], [], []>} : vector<2x16xf32>, vector<16x256xf32>, vector<2x256xf32> -> vector<2x256xf32>
    %c0_4 = arith.constant 0 : index
    %4 = memref.load %arg6[%c0_4] : memref<1xf32, #tpu.memory_space<smem>>
    %5 = vector.broadcast %4 : f32 to vector<1x256xf32>
    %6 = vector.extract_strided_slice %3 {offsets = [0, 0], sizes = [1, 256], strides = [1, 1]} : vector<2x256xf32> to vector<1x256xf32>
    %c0_5 = arith.constant 0 : index
    %7 = memref.load %arg4[%c0_5] : memref<2xf32, #tpu.memory_space<smem>>
    %8 = vector.broadcast %7 : f32 to vector<1x256xf32>
    %9 = arith.addf %6, %8 : vector<1x256xf32>
    %cst_6 = arith.constant 0.000000e+00 : f32
    %10 = vector.broadcast %cst_6 : f32 to vector<1x256xf32>
    %11 = arith.maximumf %9, %10 : vector<1x256xf32>
    %c0_7 = arith.constant 0 : index
    %12 = memref.load %arg5[%c0_7] : memref<2xf32, #tpu.memory_space<smem>>
    %13 = vector.broadcast %12 : f32 to vector<1x256xf32>
    %14 = arith.mulf %11, %13 : vector<1x256xf32>
    %15 = arith.addf %5, %14 : vector<1x256xf32>
    %16 = vector.extract_strided_slice %3 {offsets = [1, 0], sizes = [1, 256], strides = [1, 1]} : vector<2x256xf32> to vector<1x256xf32>
    %c1 = arith.constant 1 : index
    %17 = memref.load %arg4[%c1] : memref<2xf32, #tpu.memory_space<smem>>
    %18 = vector.broadcast %17 : f32 to vector<1x256xf32>
    %19 = arith.addf %16, %18 : vector<1x256xf32>
    %cst_8 = arith.constant 0.000000e+00 : f32
    %20 = vector.broadcast %cst_8 : f32 to vector<1x256xf32>
    %21 = arith.maximumf %19, %20 : vector<1x256xf32>
    %c1_9 = arith.constant 1 : index
    %22 = memref.load %arg5[%c1_9] : memref<2xf32, #tpu.memory_space<smem>>
    %23 = vector.broadcast %22 : f32 to vector<1x256xf32>
    %24 = arith.mulf %21, %23 : vector<1x256xf32>
    %25 = arith.addf %15, %24 : vector<1x256xf32>
    %26 = arith.negf %25 : vector<1x256xf32>
    %27 = math.exp %26 : vector<1x256xf32>
    %cst_10 = arith.constant 1.000000e+00 : f32
    %28 = vector.broadcast %cst_10 : f32 to vector<1x256xf32>
    %29 = arith.addf %28, %27 : vector<1x256xf32>
    %30 = arith.divf %28, %29 : vector<1x256xf32>
    %31 = vector.broadcast %30 : vector<1x256xf32> to vector<16x256xf32>
    %32 = arith.mulf %1, %31 : vector<16x256xf32>
    %c0_11 = arith.constant 0 : index
    %c0_12 = arith.constant 0 : index
    %c0_13 = arith.constant 0 : index
    %33 = vector.load %arg7[%c0_11, %c0_12, %c0_13] : memref<1x16x256xf32, #tpu.memory_space<vmem>>, vector<1x16x256xf32>
    %34 = vector.shape_cast %33 : vector<1x16x256xf32> to vector<16x256xf32>
    %35 = vector.shape_cast %32 : vector<16x256xf32> to vector<1x16x256xf32>
    tpu.vector_store %arg7[%c0_11, %c0_12, %c0_13], %35 {strides = array<i32>} : memref<1x16x256xf32, #tpu.memory_space<vmem>>, vector<1x16x256xf32>,
    return
  }
  func.func @transform_0(%arg0: i32, %arg1: i32) -> (i32, i32, i32) {
    %c0_i32 = arith.constant 0 : i32
    %c0_i32_0 = arith.constant 0 : i32
    return %arg0, %c0_i32, %arg1 : i32, i32, i32
  }
  func.func @transform_1(%arg0: i32, %arg1: i32) -> (i32, i32) {
    %c0_i32 = arith.constant 0 : i32
    %c0_i32_0 = arith.constant 0 : i32
    %c0_i32_1 = arith.constant 0 : i32
    return %c0_i32, %c0_i32_0 : i32, i32
  }
  func.func @transform_2(%arg0: i32, %arg1: i32) -> i32 {
    %c0_i32 = arith.constant 0 : i32
    %c0_i32_0 = arith.constant 0 : i32
    return %c0_i32 : i32
  }
  func.func @transform_3(%arg0: i32, %arg1: i32) -> i32 {
    %c0_i32 = arith.constant 0 : i32
    %c0_i32_0 = arith.constant 0 : i32
    return %c0_i32 : i32
  }
  func.func @transform_4(%arg0: i32, %arg1: i32) -> i32 {
    %c0_i32 = arith.constant 0 : i32
    %c0_i32_0 = arith.constant 0 : i32
    return %c0_i32 : i32
  }
  func.func @transform_5(%arg0: i32, %arg1: i32) -> (i32, i32, i32) {
    %c0_i32 = arith.constant 0 : i32
    %c0_i32_0 = arith.constant 0 : i32
    return %arg0, %c0_i32, %arg1 : i32, i32, i32
  }
}

</mosaic_0001>

<llo_original>
// kernel: tpu_custom_call.1
$region0: #{tpu_custom_call.1}
  #allocation0 [shape = 'u32[]', space=smem, size = 0x4, offset = 0x4, fixed_abs, tag = 'smem constant byte address 0x4 - core index']
  #allocation1 [shape = 'u32[144,128]{1,0:T(1,128)}', space=vmem, size = 0x12000, scoped, tag = 'internal scratch']
  #allocation2 [shape = 'f32[1]{0:T(128)S(6)}', space=smem, size = 0x200, scoped, tag = 'scoped memory for tpu_custom_call.1']
  %s0 = inlined_call_operand.hbm [shape: f32[2,16,256], index: 0, kind: input, shape index: {}]
  %s1 = inlined_call_operand.vmem [shape: f32[2,16], index: 1, kind: input, shape index: {}]
  %s2 = inlined_call_operand.vmem [shape: f32[2], index: 2, kind: input, shape index: {}]
  %s3 = inlined_call_operand.vmem [shape: f32[2], index: 3, kind: input, shape index: {}]
  %s4 = inlined_call_operand.<no memory space> [shape: f32[1], index: 4, kind: input, shape index: {}]
  %s5 = inlined_call_operand.hbm [shape: f32[2,16,256], index: 5, kind: output, shape index: {}]
  %s6 = sld [smem:[#allocation0]]
  $region65: #{tpu_custom_call.1} parent=0
    _
  %s8 = ssub.s32 1, %s6
  %s9 = scalar_select 0, %s8, %s6
  %10 = sst [smem:[#allocation2]] %s4
  $region1: #{tpu_custom_call.1} parent=0
    #allocation3 [shape = 'u8[32768]{0}', space=vmem, size = 0x8000, scoped, tag = 'input window, operand 0']
    #allocation4 [shape = 's32[2]{0}', space=sflag, size = 0x8, scoped, tag = 'scoped memory for tpu_custom_call.1']
    #allocation5 [shape = 's32[2]{0}', space=sflag, size = 0x8, scoped, tag = 'scoped memory for tpu_custom_call.1']
    #allocation6 [shape = 's32[2]{0}', space=sflag, size = 0x8, scoped, tag = 'scoped memory for tpu_custom_call.1']
    #allocation7 [shape = 'u8[512]{0}', space=smem, size = 0x200, scoped, tag = 'input window, operand 2, single buffered']
    #allocation8 [shape = 'u8[512]{0}', space=smem, size = 0x200, scoped, tag = 'input window, operand 3, single buffered']
    #allocation9 [shape = 's32[1]{0}', space=sflag, size = 0x4, scoped, tag = 'scoped memory for tpu_custom_call.1']
    #allocation10 [shape = 'u8[32768]{0}', space=vmem, size = 0x8000, scoped, tag = 'output window, operand 0']
    %11 = vsyncpa [#allocation4], 0
    %s12 = scalar_lea.sflag [#allocation4], 1
    %13 = vsyncpa %s12, 0
    %14 = vsyncpa [#allocation6], 0
    %15 = vsyncpa [#allocation9], 0
    %16 = vsyncpa [#allocation5], 0
    %s17 = scalar_lea.sflag [#allocation5], 1
    %18 = vsyncpa %s17, 0
    loop: start=0, step=1, limit=4
    $region2: #{tpu_custom_call.1} parent=1 // loop_pre_header
      _
    $region3: #{tpu_custom_call.1} parent=1 // loop_header
      %s20 = sphi 0, %s24
      %p21 = scmp.ge.s32.totalorder %s20, 4
      %s27 = sphi 0, %s39
      %s28 = sphi 0, %s35
      %s29 = sphi 0, %s27
      %s30 = sphi 0, %s28
      %s31 = sphi 0, %s29
      %s32 = sphi 0, %s30
      %s44 = sphi 0, %s46
      %s47 = sphi 0, %s44
      %s48 = sphi 0, %s47
      %s64 = sphi 0, %s48
      %s68 = sphi 0, %s68
      %s70 = sphi 0, %s68
      %s71 = sphi 0, %s70
      %s85 = sphi 0, %s71
      %s89 = sphi 0, %s89
      %s91 = sphi 0, %s89
      %s92 = sphi 0, %s91
      %s106 = sphi 0, %s92
      %s110 = sphi 0, %s110
      %s112 = sphi 0, %s110
      %s113 = sphi 0, %s112
      %s127 = sphi 0, %s113
      %s131 = sphi 0, %s131
      %s133 = sphi 0, %s131
      %s134 = sphi 0, %s133
      %s148 = sphi 0, %s134
      %s156 = sphi 0, %s158
      %s159 = sphi 0, %s156
      %s160 = sphi 0, %s159
      %s176 = sphi 0, %s160
    $region4: #{tpu_custom_call.1} parent=1 // loop_header_branch
      %23 = sbr.rel (%p21) target = $region8
    $region5: #{tpu_custom_call.1} parent=1 // loop_body
      %s25 = ssub.s32 %s20, 1
      %s26 = ssub.s32 %s20, 2
      %s33 = sadd.s32 1, %s28
      %p34 = scmp.ge.s32.totalorder %s33, 1
      %s35 = scalar_select %p34, 0, %s33
      %s36 = sadd.s32 1, %s27
      %s37 = scalar_select %p34, %s36, %s27
      %p38 = scmp.ge.s32.totalorder %s37, 2
      %s39 = scalar_select %p38, 0, %s37
      %s40 = ssub.s32 %s27, %s39
      %s41 = ssub.s32 %s28, %s35
      %s42 = sor.u32 %s40, %s41
      %p43 = scmp.eq.s32.totalorder %s42, 0
      %s45 = sadd.s32 %s44, 1
      %s46 = scalar_select %p43, %s44, %s45
      %p49 = pneg %p43
      %p50 = scmp.eq.s32.totalorder %s20, 1
      %p51 = por %p49, %p50
      %p52 = scmp.ne.s32.totalorder %s44, %s47
      %p53 = scmp.eq.s32.totalorder %s20, 0
      %p54 = por %p52, %p53
      %p55 = scmp.ne.s32.totalorder %s44, %s47
      %p56 = scmp.eq.s32.totalorder %s25, 1
      %p57 = por %p55, %p56
      %p58 = scmp.ne.s32.totalorder %s47, %s48
      %p59 = scmp.eq.s32.totalorder %s25, 0
      %p60 = por %p58, %p59
      %p61 = scmp.ne.s32.totalorder %s47, %s48
      %p62 = scmp.eq.s32.totalorder %s26, 1
      %p63 = por %p61, %p62
      %p65 = scmp.ne.s32.totalorder %s48, %s64
      %p66 = scmp.eq.s32.totalorder %s26, 0
      %p67 = por %p65, %p66
      %s69 = sadd.s32 %s68, 1
      %p72 = scmp.eq.s32.totalorder %s20, 1
      %p73 = scmp.ne.s32.totalorder %s68, %s70
      %p74 = scmp.eq.s32.totalorder %s20, 0
      %p75 = por %p73, %p74
      %p76 = scmp.ne.s32.totalorder %s68, %s70
      %p77 = scmp.eq.s32.totalorder %s25, 1
      %p78 = por %p76, %p77
      %p79 = scmp.ne.s32.totalorder %s70, %s71
      %p80 = scmp.eq.s32.totalorder %s25, 0
      %p81 = por %p79, %p80
      %p82 = scmp.ne.s32.totalorder %s70, %s71
      %p83 = scmp.eq.s32.totalorder %s26, 1
      %p84 = por %p82, %p83
      %p86 = scmp.ne.s32.totalorder %s71, %s85
      %p87 = scmp.eq.s32.totalorder %s26, 0
      %p88 = por %p86, %p87
      %s90 = sadd.s32 %s89, 1
      %p93 = scmp.eq.s32.totalorder %s20, 1
      %p94 = scmp.ne.s32.totalorder %s89, %s91
      %p95 = scmp.eq.s32.totalorder %s20, 0
      %p96 = por %p94, %p95
      %p97 = scmp.ne.s32.totalorder %s89, %s91
      %p98 = scmp.eq.s32.totalorder %s25, 1
      %p99 = por %p97, %p98
      %p100 = scmp.ne.s32.totalorder %s91, %s92
      %p101 = scmp.eq.s32.totalorder %s25, 0
      %p102 = por %p100, %p101
      %p103 = scmp.ne.s32.totalorder %s91, %s92
      %p104 = scmp.eq.s32.totalorder %s26, 1
      %p105 = por %p103, %p104
      %p107 = scmp.ne.s32.totalorder %s92, %s106
      %p108 = scmp.eq.s32.totalorder %s26, 0
      %p109 = por %p107, %p108
      %s111 = sadd.s32 %s110, 1
      %p114 = scmp.eq.s32.totalorder %s20, 1
      %p115 = scmp.ne.s32.totalorder %s110, %s112
      %p116 = scmp.eq.s32.totalorder %s20, 0
      %p117 = por %p115, %p116
      %p118 = scmp.ne.s32.totalorder %s110, %s112
      %p119 = scmp.eq.s32.totalorder %s25, 1
      %p120 = por %p118, %p119
      %p121 = scmp.ne.s32.totalorder %s112, %s113
      %p122 = scmp.eq.s32.totalorder %s25, 0
      %p123 = por %p121, %p122
      %p124 = scmp.ne.s32.totalorder %s112, %s113
      %p125 = scmp.eq.s32.totalorder %s26, 1
      %p126 = por %p124, %p125
      %p128 = scmp.ne.s32.totalorder %s113, %s127
      %p129 = scmp.eq.s32.totalorder %s26, 0
      %p130 = por %p128, %p129
      %s132 = sadd.s32 %s131, 1
      %p135 = scmp.eq.s32.totalorder %s20, 1
      %p136 = scmp.ne.s32.totalorder %s131, %s133
      %p137 = scmp.eq.s32.totalorder %s20, 0
      %p138 = por %p136, %p137
      %p139 = scmp.ne.s32.totalorder %s131, %s133
      %p140 = scmp.eq.s32.totalorder %s25, 1
      %p141 = por %p139, %p140
      %p142 = scmp.ne.s32.totalorder %s133, %s134
      %p143 = scmp.eq.s32.totalorder %s25, 0
      %p144 = por %p142, %p143
      %p145 = scmp.ne.s32.totalorder %s133, %s134
      %p146 = scmp.eq.s32.totalorder %s26, 1
      %p147 = por %p145, %p146
      %p149 = scmp.ne.s32.totalorder %s134, %s148
      %p150 = scmp.eq.s32.totalorder %s26, 0
      %p151 = por %p149, %p150
      %s152 = ssub.s32 %s27, %s39
      %s153 = ssub.s32 %s28, %s35
      %s154 = sor.u32 %s152, %s153
      %p155 = scmp.eq.s32.totalorder %s154, 0
      %s157 = sadd.s32 %s156, 1
      %s158 = scalar_select %p155, %s156, %s157
      %p161 = pneg %p155
      %p162 = scmp.eq.s32.totalorder %s20, 1
      %p163 = por %p161, %p162
      %p164 = scmp.ne.s32.totalorder %s156, %s159
      %p165 = scmp.eq.s32.totalorder %s20, 0
      %p166 = por %p164, %p165
      %p167 = scmp.ne.s32.totalorder %s156, %s159
      %p168 = scmp.eq.s32.totalorder %s25, 1
      %p169 = por %p167, %p168
      %p170 = scmp.ne.s32.totalorder %s159, %s160
      %p171 = scmp.eq.s32.totalorder %s25, 0
      %p172 = por %p170, %p171
      %p173 = scmp.ne.s32.totalorder %s159, %s160
      %p174 = scmp.eq.s32.totalorder %s26, 1
      %p175 = por %p173, %p174
      %p177 = scmp.ne.s32.totalorder %s160, %s176
      %p178 = scmp.eq.s32.totalorder %s26, 0
      %p179 = por %p177, %p178
      %p180 = scmp.le.s32.totalorder 1, %s20
      %p181 = scmp.lt.s32.totalorder %s20, 3
      %p182 = pnand %p180, %p181
      %p183 = pneg %p182
      // Predicated region
      $region9: #{tpu_custom_call.1} parent=5 // pred_check
        _
      $region10: #{tpu_custom_call.1} parent=5 // pred_check_branch
        %185 = sbr.rel (%p182) target = $region12
      $region11: #{tpu_custom_call.1} parent=5 // pred_region
        %s186 = ssub.s32 %s20, 1
        // Predicated region
        $region13: #{tpu_custom_call.1} parent=11 // pred_check
          %p187 = pneg %p81
        $region14: #{tpu_custom_call.1} parent=11 // pred_check_branch
          %189 = sbr.rel (%p187) target = $region16
        $region15: #{tpu_custom_call.1} parent=11 // pred_region
          _
        $region16: #{tpu_custom_call.1} parent=11 // pred_fallthru
          _
        // Predicated region
        $region17: #{tpu_custom_call.1} parent=11 // pred_check
          %p190 = pneg %p102
        $region18: #{tpu_custom_call.1} parent=11 // pred_check_branch
          %192 = sbr.rel (%p190) target = $region20
        $region19: #{tpu_custom_call.1} parent=11 // pred_region
          %s194 = ssub.s32 16, 16
          %195 = vsyncadd [#allocation6], %s194
          %s197 = sshll.u32 %s2, 4
          %s198 = int_to_ptr.vmem [resolvable:$true] %s197
          %200 = dma.vmem_to_smem %s198, 16, [#allocation7], [#allocation6]
        $region20: #{tpu_custom_call.1} parent=11 // pred_fallthru
          _
        // Predicated region
        $region21: #{tpu_custom_call.1} parent=11 // pred_check
          %p201 = pneg %p123
        $region22: #{tpu_custom_call.1} parent=11 // pred_check_branch
          %203 = sbr.rel (%p201) target = $region24
        $region23: #{tpu_custom_call.1} parent=11 // pred_region
          %s205 = ssub.s32 16, 16
          %206 = vsyncadd [#allocation9], %s205
          %s208 = sshll.u32 %s3, 4
          %s209 = int_to_ptr.vmem [resolvable:$true] %s208
          %211 = dma.vmem_to_smem %s209, 16, [#allocation8], [#allocation9]
        $region24: #{tpu_custom_call.1} parent=11 // pred_fallthru
          _
        // Predicated region
        $region25: #{tpu_custom_call.1} parent=11 // pred_check
          %p212 = pneg %p144
        $region26: #{tpu_custom_call.1} parent=11 // pred_check_branch
          %214 = sbr.rel (%p212) target = $region28
        $region27: #{tpu_custom_call.1} parent=11 // pred_region
          _
        $region28: #{tpu_custom_call.1} parent=11 // pred_fallthru
          _
      $region12: #{tpu_custom_call.1} parent=5 // pred_fallthru
        _
      %p215 = scmp.lt.s32.totalorder %s20, 2
      // Predicated region
      $region29: #{tpu_custom_call.1} parent=5 // pred_check
        %p216 = pneg %p215
      $region30: #{tpu_custom_call.1} parent=5 // pred_check_branch
        %218 = sbr.rel (%p216) target = $region32
      $region31: #{tpu_custom_call.1} parent=5 // pred_region
        // Predicated region
        $region33: #{tpu_custom_call.1} parent=31 // pred_check
          %p219 = pneg %p54
        $region34: #{tpu_custom_call.1} parent=31 // pred_check_branch
          %221 = sbr.rel (%p219) target = $region36
        $region35: #{tpu_custom_call.1} parent=31 // pred_region
          %s222 = sand.u32 %s44, 1
          %s223 = scalar_lea.sflag [#allocation4], %s222
          %s224 = sand.u32 %s44, 1
          %s225 = smul.addr %s224, 32
          %s226 = scalar_lea.vmem [#allocation3], %s225
          %s227 = smul.u32 2, %s28
          %s229 = ssub.s32 512, 512
          %230 = vsyncadd %s223, %s229
          %s231 = smul.addr %s27, 4
          %s232 = sadd.s32 %s227, %s231
          %s233 = smul.addr %s232, 128
          %s234 = scalar_lea.hbm %s0, %s233
          %s235 = sshll.u32 %s226, 4
          %s236 = int_to_ptr.vmem [resolvable:$true] %s235
          %241 = dma.hbm_to_vmem [thread:$0]  %s234, 512, %s236, %s223, 256, 256, 16
        $region36: #{tpu_custom_call.1} parent=31 // pred_fallthru
          _
      $region32: #{tpu_custom_call.1} parent=5 // pred_fallthru
        _
      %p242 = scmp.le.s32.totalorder 1, %s20
      %p243 = scmp.lt.s32.totalorder %s20, 3
      %p244 = pnand %p242, %p243
      %p245 = pneg %p244
      // Predicated region
      $region37: #{tpu_custom_call.1} parent=5 // pred_check
        _
      $region38: #{tpu_custom_call.1} parent=5 // pred_check_branch
        %247 = sbr.rel (%p244) target = $region40
      $region39: #{tpu_custom_call.1} parent=5 // pred_region
        %s248 = ssub.s32 %s20, 1
        %s249 = sand.u32 %s47, 1
        %s250 = scalar_lea.sflag [#allocation4], %s249
        %s251 = sand.u32 %s47, 1
        %s252 = smul.addr %s251, 32
        %s253 = scalar_lea.vmem [#allocation3], %s252
        // Predicated region
        $region41: #{tpu_custom_call.1} parent=39 // pred_check
          %p254 = pneg %p60
        $region42: #{tpu_custom_call.1} parent=39 // pred_check_branch
          %256 = sbr.rel (%p254) target = $region44
        $region43: #{tpu_custom_call.1} parent=39 // pred_region
          %257 = dma.done %s250, 512
        $region44: #{tpu_custom_call.1} parent=39 // pred_fallthru
          _
        // Predicated region
        $region45: #{tpu_custom_call.1} parent=39 // pred_check
          %p258 = pneg %p102
        $region46: #{tpu_custom_call.1} parent=39 // pred_check_branch
          %260 = sbr.rel (%p258) target = $region48
        $region47: #{tpu_custom_call.1} parent=39 // pred_region
          %261 = dma.done [#allocation6], 16
        $region48: #{tpu_custom_call.1} parent=39 // pred_fallthru
          _
        // Predicated region
        $region49: #{tpu_custom_call.1} parent=39 // pred_check
          %p262 = pneg %p123
        $region50: #{tpu_custom_call.1} parent=39 // pred_check_branch
          %264 = sbr.rel (%p262) target = $region52
        $region51: #{tpu_custom_call.1} parent=39 // pred_region
          %265 = dma.done [#allocation9], 16
        $region52: #{tpu_custom_call.1} parent=39 // pred_fallthru
          _
        %266 = sfence
        %s267 = sand.u32 %s47, 1
        %s268 = scalar_lea.sflag [#allocation4], %s267
        %s269 = sand.u32 %s47, 1
        %s270 = smul.addr %s269, 32
        %s271 = scalar_lea.vmem [#allocation3], %s270
        %p272 = pneg %p60
        %p273 = pneg %p57
        %p274 = pneg %p81
        %p275 = pneg %p78
        %p276 = pneg %p102
        %p277 = pneg %p99
        %p278 = pneg %p123
        %p279 = pneg %p120
        %p280 = pneg %p144
        %p281 = pneg %p141
        %p282 = pneg %p172
        %p283 = pneg %p169
        %s284 = sand.u32 %s159, 1
        %s285 = scalar_lea.sflag [#allocation5], %s284
        %s286 = sand.u32 %s159, 1
        %s287 = smul.addr %s286, 32
        %s288 = scalar_lea.vmem [#allocation10], %s287
        %s289 = smul.u32 2, %s30
        %s290 = smul.u32 2, %s30
        %v291 = vld [vmem:[%s253] sm:$0xff]
        %v292 = vld [vmem:[%s253 + $0x8] sm:$0xff]
        %v293 = vld [vmem:[%s253 + $0x10] sm:$0xff]
        %v294 = vld [vmem:[%s253 + $0x18] sm:$0xff]
        %v295 = vld [vmem:[%s1] sm:$0x3]
        %vm296 = vcmask 130048
        %v298 = vsel %vm296, %v295, 0
        %300 = vmatprep.subr.mxu0 %v292
        %301 = vmatpush1.msra.mxu0 %v291
        %302 = vmatprep.subr.mxu0 %v294
        %303 = vmatpush1.msra.mxu0 %v293
        %304 = vmatprep.subr.mxu0 0.0
        %305 = vmatpush1.msra.mxu0 0.0
        %306 = vmatprep.subr.mxu0 0.0
        %307 = vmatpush1.msra.mxu0 0.0
        %308 = vmatprep.subr.mxu0 0.0
        %309 = vmatpush1.msra.mxu0 0.0
        %310 = vmatprep.subr.mxu0 0.0
        %311 = vmatpush1.msra.mxu0 0.0
        %312 = vmatprep.subr.mxu0 0.0
        %313 = vmatpush1.msra.mxu0 0.0
        %314 = vmatprep.subr.mxu0 0.0
        %315 = vmatpush1.msra.mxu0 0.0
        %316 = vmatprep.subr.mxu0 0.0
        %317 = vmatpush1.msra.mxu0 0.0
        %318 = vmatprep.subr.mxu0 0.0
        %319 = vmatpush1.msra.mxu0 0.0
        %320 = vmatprep.subr.mxu0 0.0
        %321 = vmatpush1.msra.mxu0 0.0
        %322 = vmatprep.subr.mxu0 0.0
        %323 = vmatpush1.msra.mxu0 0.0
        %324 = vmatprep.subr.mxu0 0.0
        %325 = vmatpush1.msra.mxu0 0.0
        %326 = vmatprep.subr.mxu0 0.0
        %327 = vmatpush1.msra.mxu0 0.0
        %328 = vmatprep.subr.mxu0 0.0
        %329 = vmatpush1.msra.mxu0 0.0
        %330 = vmatprep.subr.mxu0 0.0
        %331 = vmatpush1.msra.mxu0 0.0
        %332 = vmatprep.subr.mxu0 0.0
        %333 = vmatpush1.msra.mxu0 0.0
        %334 = vmatprep.subr.mxu0 0.0
        %335 = vmatpush1.msra.mxu0 0.0
        %336 = vmatprep.subr.mxu0 0.0
        %337 = vmatpush1.msra.mxu0 0.0
        %338 = vmatprep.subr.mxu0 0.0
        %339 = vmatpush1.msra.mxu0 0.0
        %340 = vmatprep.subr.mxu0 0.0
        %341 = vmatpush1.msra.mxu0 0.0
        %342 = vmatprep.subr.mxu0 0.0
        %343 = vmatpush1.msra.mxu0 0.0
        %344 = vmatprep.subr.mxu0 0.0
        %345 = vmatpush1.msra.mxu0 0.0
        %346 = vmatprep.subr.mxu0 0.0
        %347 = vmatpush1.msra.mxu0 0.0
        %348 = vmatprep.subr.mxu0 0.0
        %349 = vmatpush1.msra.mxu0 0.0
        %350 = vmatprep.subr.mxu0 0.0
        %351 = vmatpush1.msra.mxu0 0.0
        %352 = vmatprep.subr.mxu0 0.0
        %353 = vmatpush1.msra.mxu0 0.0
        %354 = vmatprep.subr.mxu0 0.0
        %355 = vmatpush1.msra.mxu0 0.0
        %356 = vmatprep.subr.mxu0 0.0
        %357 = vmatpush1.msra.mxu0 0.0
        %358 = vmatprep.subr.mxu0 0.0
        %359 = vmatpush1.msra.mxu0 0.0
        %360 = vmatprep.subr.mxu0 0.0
        %361 = vmatpush1.msra.mxu0 0.0
        %362 = vmatprep.subr.mxu0 0.0
        %363 = vmatpush1.msra.mxu0 0.0
        %364 = vmatprep.mubr.f32.mxu0 0.0
        %365 = vmatmul.mubr.f32.gmra.mrb[0].mxu0 %v298
        %v366 = vpop.f32.mrb[0].mxu0
        %v367 = vadd.f32 0.0, %v366
        %v368 = vpop.f32.mrb[0].mxu0
        %v369 = vadd.f32 0.0, %v368
        %370 = vdwg.mxu0
        %s371 = sld [smem:[#allocation2]]
        %v372 = vstv %s371
        %s373 = sld [smem:[#allocation7]]
        %v374 = vstv %s373
        %v375 = vadd.f32 %v367, %v374
        %v376 = vadd.f32 %v369, %v374
        %v377 = vmax.f32 %v375, 0.0
        %v378 = vmax.f32 %v376, 0.0
        %s379 = sld [smem:[#allocation8]]
        %v380 = vstv %s379
        %v381 = vmul.f32 %v377, %v380
        %v382 = vmul.f32 %v378, %v380
        %v383 = vadd.f32 %v372, %v381
        %v384 = vadd.f32 %v372, %v382
        %s385 = sld [smem:[#allocation7 + $0x1]]
        %v386 = vstv %s385
        %v387 = vadd.f32 %v367, %v386
        %v388 = vadd.f32 %v369, %v386
        %v389 = vmax.f32 %v387, 0.0
        %v390 = vmax.f32 %v388, 0.0
        %s391 = sld [smem:[#allocation8 + $0x1]]
        %v392 = vstv %s391
        %v393 = vmul.f32 %v389, %v392
        %v394 = vmul.f32 %v390, %v392
        %v397 = vrot.slane %v393, 1
        %v398 = vrot.slane %v394, 1
        %v401 = vadd.f32 %v383, %v397
        %v402 = vadd.f32 %v384, %v398
        %v403 = vxor.u32 %v401, 2147483648
        %v404 = vxor.u32 %v402, 2147483648
        %v405 = vmul.f32 %v403, 1.442695
        %v406 = vpow.pop %v405
        %v407 = vmul.f32 %v404, 1.442695
        %v408 = vpow.pop %v407
        %v409 = vadd.f32 %v406, 1.0
        %v410 = vadd.f32 %v408, 1.0
        %v411 = vrcp.pop %v409
        %v412 = vmul.f32 1.0, %v411
        %v413 = vrcp.pop %v410
        %v414 = vmul.f32 1.0, %v413
        %v415 = vlaneseq
        %v416 = vshrl.u32 %v415, 7
        %v417 = vsub.s32 0, %v416
        %v418 = vrot.slane %v412, %v417
        %v419 = vlaneseq
        %v420 = vshrl.u32 %v419, 7
        %v421 = vsub.s32 0, %v420
        %v422 = vrot.slane %v414, %v421
        %v423 = vmul.f32 %v291, %v418
        %v424 = vmul.f32 %v292, %v422
        %v425 = vmul.f32 %v293, %v418
        %v426 = vmul.f32 %v294, %v422
        %427 = vst [vmem:[%s288] sm:$0xff] %v423
        %428 = vst [vmem:[%s288 + $0x8] sm:$0xff] %v424
        %429 = vst [vmem:[%s288 + $0x10] sm:$0xff] %v425
        %430 = vst [vmem:[%s288 + $0x18] sm:$0xff] %v426
        %s431 = sand.u32 %s159, 1
        %s432 = scalar_lea.sflag [#allocation5], %s431
        %s433 = sand.u32 %s159, 1
        %s434 = smul.addr %s433, 32
        %s435 = scalar_lea.vmem [#allocation10], %s434
        // Predicated region
        $region53: #{tpu_custom_call.1} parent=39 // pred_check
          %p436 = pneg %p169
        $region54: #{tpu_custom_call.1} parent=39 // pred_check_branch
          %438 = sbr.rel (%p436) target = $region56
        $region55: #{tpu_custom_call.1} parent=39 // pred_region
          %s439 = smul.u32 2, %s30
          %s441 = ssub.s32 512, 512
          %442 = vsyncadd %s432, %s441
          %s443 = smul.addr %s29, 4
          %s444 = sadd.s32 %s439, %s443
          %s445 = smul.addr %s444, 128
          %s446 = scalar_lea.hbm %s5, %s445
          %s447 = sshll.u32 %s435, 4
          %s448 = int_to_ptr.vmem [resolvable:$true] %s447
          %453 = dma.vmem_to_hbm [thread:$0]  %s448, 512, %s446, %s432, 256, 256, 16
        $region56: #{tpu_custom_call.1} parent=39 // pred_fallthru
          _
      $region40: #{tpu_custom_call.1} parent=5 // pred_fallthru
        _
      %p454 = scmp.le.s32.totalorder 2, %s20
      // Predicated region
      $region57: #{tpu_custom_call.1} parent=5 // pred_check
        %p455 = pneg %p454
      $region58: #{tpu_custom_call.1} parent=5 // pred_check_branch
        %457 = sbr.rel (%p455) target = $region60
      $region59: #{tpu_custom_call.1} parent=5 // pred_region
        %s458 = ssub.s32 %s20, 2
        // Predicated region
        $region61: #{tpu_custom_call.1} parent=59 // pred_check
          %p459 = pneg %p175
        $region62: #{tpu_custom_call.1} parent=59 // pred_check_branch
          %461 = sbr.rel (%p459) target = $region64
        $region63: #{tpu_custom_call.1} parent=59 // pred_region
          %s462 = sand.u32 %s160, 1
          %s463 = scalar_lea.sflag [#allocation5], %s462
          %s464 = sand.u32 %s160, 1
          %s465 = smul.addr %s464, 32
          %s466 = scalar_lea.vmem [#allocation10], %s465
          %467 = dma.done %s463, 512
        $region64: #{tpu_custom_call.1} parent=59 // pred_fallthru
          _
      $region60: #{tpu_custom_call.1} parent=5 // pred_fallthru
        _
    $region6: #{tpu_custom_call.1} parent=1 // loop_footer
      %s24 = sadd.s32 1, %s20
    $region7: #{tpu_custom_call.1} parent=1 // loop_footer_branch
      %19 = sbr.rel target = $region3
    $region8: #{tpu_custom_call.1} parent=1 // loop_exit
      _
    %468 = vsyncpa [#allocation4], 1
    %s469 = scalar_lea.sflag [#allocation4], 1
    %470 = vsyncpa %s469, 1
    %471 = vsyncpa [#allocation5], 1
    %s472 = scalar_lea.sflag [#allocation5], 1
    %473 = vsyncpa %s472, 1
    %474 = vsyncpa [#allocation6], 1
    %s475 = scalar_lea.sflag [#allocation6], 1
    %476 = vsyncpa %s475, 1
    %477 = vsyncpa [#allocation9], 1

</llo_original>
